<compile_context>
chip_gen: v7x
topology: tpu7x:2x2x1
jax: 0.10.0
libtpu: 0.0.40
codegen_flags: <defaults>
</compile_context>

<pallas_src>
import jax
import jax.numpy as jnp
from jax.experimental import pallas as pl
from jax.experimental.pallas import tpu as pltpu

FEAT = 9     # real input / output feature width (3x3 board, 9 Q-values)
FPAD = 16    # zero-padded lane width for the 9-wide feature axes
H1, H2, H3, H4 = 256, 128, 128, 64


def dqn2_kernel(x_ref, w1_ref, w2_ref, w3_ref, w4_ref, w5_ref, b_ref, out_ref):
    """Fused 5-layer MLP on one (tb, 16) batch tile.

    x_ref : (tb, 16) f32   (features 9..15 are zero padding; cast to bf16 here)
    wN    : bf16 (in, out); w1 row-padded to 16-in, w5 col-padded to 16-out
    b_ref : (8, 256) f32   packed biases, row r = bias of layer r+1 (zero-padded)
    out   : (tb, 16) f32   Q-values in lanes 0..8, lanes 9..15 are exactly zero
    """
    x = x_ref[...].astype(jnp.bfloat16)  # in-kernel cast, hidden under the matmuls

    h = jnp.dot(x, w1_ref[...], preferred_element_type=jnp.float32)
    h = jnp.maximum(h + b_ref[0:1, 0:H1], 0.0)
    # dropout (p=0.5): identity in eval mode

    h = jnp.dot(h.astype(jnp.bfloat16), w2_ref[...],
                preferred_element_type=jnp.float32)
    h = jnp.maximum(h + b_ref[1:2, 0:H2], 0.0)

    h = jnp.dot(h.astype(jnp.bfloat16), w3_ref[...],
                preferred_element_type=jnp.float32)
    h = jnp.maximum(h + b_ref[2:3, 0:H3], 0.0)
    # dropout (p=0.5): identity in eval mode

    h = jnp.dot(h.astype(jnp.bfloat16), w4_ref[...],
                preferred_element_type=jnp.float32)
    h = jnp.maximum(h + b_ref[3:4, 0:H4], 0.0)

    out_ref[...] = (jnp.dot(h.astype(jnp.bfloat16), w5_ref[...],
                            preferred_element_type=jnp.float32)
                    + b_ref[4:5, 0:FPAD])


def prepare_params(params):
    """Pad + cast params for the kernel.

    params: list of (W (in, out) f32, b (1, out) f32)  (PyTorch weights already
    transposed to (in, out)).
    Returns (w1..w5 in bf16 with w1 row-padded to 16-in and w5 col-padded to
    16-out, plus one packed (8, 256) f32 bias array).
    """
    (w1, b1), (w2, b2), (w3, b3), (w4, b4), (w5, b5) = params

    w1p = jnp.zeros((FPAD, H1), jnp.float32).at[:w1.shape[0], :].set(w1)
    w5p = jnp.zeros((H4, FPAD), jnp.float32).at[:, :w5.shape[1]].set(w5)

    bias_pack = jnp.zeros((8, 256), jnp.float32)
    for r, b in enumerate((b1, b2, b3, b4, b5)):
        bias_pack = bias_pack.at[r, :b.shape[1]].set(b[0])

    ws = [w1p, w2, w3, w4, w5p]
    return tuple(w.astype(jnp.bfloat16) for w in ws) + (bias_pack,)


def _round_up(x, m):
    return ((x + m - 1) // m) * m


def _choose_tiling(B, max_tb=1024):
    """Pick (padded batch, batch tile).

    - B <= 8: single tiny tile (acting path; everything is fixed overhead).
    - otherwise: at least 2 tiles (so dimension_semantics=("parallel",) can
      feed both v7x TensorCores) and at most ceil(B / max_tb) tiles, i.e. large
      batches run in very few grid steps (grid-step overhead >> per-tile work).
    """
    bp8 = _round_up(B, 8)
    if bp8 <= 8:
        return bp8, bp8
    n_tiles = max(2, -(-bp8 // max_tb))
    tb = _round_up(-(-bp8 // n_tiles), 8)
    return tb * n_tiles, tb


def dqn2_forward(x, flat_params, max_tb=1024):
    """x: (B, 9) float32. flat_params: output of prepare_params."""
    B, F = x.shape
    assert F == FEAT, F
    w1, w2, w3, w4, w5, bias_pack = flat_params

    Bp, tb = _choose_tiling(B, max_tb)

    # Single fused pad: batch -> Bp rows, features 9 -> 16 lanes. Stays f32;
    # the bf16 cast happens inside the kernel.
    xp = jnp.zeros((Bp, FPAD), jnp.float32).at[:B, :FEAT].set(x)

    grid = (Bp // tb,)

    # Weights / packed biases: whole-array blocks with a constant block index,
    # so they are DMA'd once and stay parked in VMEM across all batch tiles.
    def pin(a):
        return pl.BlockSpec(a.shape, lambda i: (0,) * a.ndim)

    in_specs = ([pl.BlockSpec((tb, FPAD), lambda i: (i, 0))]
                + [pin(a) for a in (w1, w2, w3, w4, w5, bias_pack)])
    out_specs = pl.BlockSpec((tb, FPAD), lambda i: (i, 0))

    # Advisory cost estimate so XLA can overlap this tiny call with neighbors.
    flops = 2 * Bp * (FPAD * H1 + H1 * H2 + H2 * H3 + H3 * H4 + H4 * FPAD)
    param_bytes = sum(int(a.size) * a.dtype.itemsize
                      for a in (w1, w2, w3, w4, w5, bias_pack))
    bytes_accessed = param_bytes + 2 * Bp * FPAD * 4  # f32 in + f32 out

    out = pl.pallas_call(
        dqn2_kernel,
        out_shape=jax.ShapeDtypeStruct((Bp, FPAD), jnp.float32),
        grid=grid,
        in_specs=in_specs,
        out_specs=out_specs,
        compiler_params=pltpu.CompilerParams(
            dimension_semantics=("parallel",)),
        cost_estimate=pl.CostEstimate(flops=flops,
                                      transcendentals=0,
                                      bytes_accessed=bytes_accessed),
    )(xp, w1, w2, w3, w4, w5, bias_pack)

    # Padded batch rows / lanes 9..15 are exactly zero and sliced away here.
    return out[:B, :FEAT]


def init_params(key):
    """Mimic PyTorch Linear default init U(-1/sqrt(in), 1/sqrt(in))."""
    dims = [(9, 256), (256, 128), (128, 128), (128, 64), (64, 9)]
    params = []
    for (fan_in, fan_out) in dims:
        key, kw, kb = jax.random.split(key, 3)
        bound = 1.0 / jnp.sqrt(fan_in)
        # Stored as (in, out): PyTorch's (out, in) weight transposed, so the
        # kernel computes x @ W + b.
        w = jax.random.uniform(kw, (fan_in, fan_out), jnp.float32, -bound, bound)
        b = jax.random.uniform(kb, (1, fan_out), jnp.float32, -bound, bound)
        params.append((w, b))
    return params


def reference_forward_bf16(x, params):
    """Pure-JAX reference mirroring the kernel's bf16-in / f32-accumulate recipe."""
    h = x
    for i, (w, b) in enumerate(params):
        h = jnp.dot(h.astype(jnp.bfloat16), w.astype(jnp.bfloat16),
                    preferred_element_type=jnp.float32) + b
        if i < len(params) - 1:
            h = jnp.maximum(h, 0.0)
    return h


def reference_forward_f32(x, params):
    h = x
    for i, (w, b) in enumerate(params):
        h = h @ w + b
        if i < len(params) - 1:
            h = jnp.maximum(h, 0.0)
    return h


if __name__ == "__main__":
    key = jax.random.PRNGKey(0)
    key, kp = jax.random.split(key)
    params = init_params(kp)
    flat_params = prepare_params(params)

    fwd = jax.jit(dqn2_forward)

    # Moderate batch: exercises the multi-tile grid (2 tiles of 32 rows).
    key, kx1 = jax.random.split(key)
    B1 = 64
    x1 = jax.random.uniform(kx1, (B1, FEAT), jnp.float32, -1.0, 1.0)
    out1 = jax.block_until_ready(fwd(x1, flat_params))
    assert out1.shape == (B1, FEAT), out1.shape
    ref1 = reference_forward_bf16(x1, params)
    assert jnp.allclose(out1, ref1, atol=2e-3, rtol=2e-3), "mismatch (batched)"
    assert jnp.allclose(out1, reference_forward_f32(x1, params),
                        atol=5e-2, rtol=5e-2), "mismatch vs f32 reference"

    # Tiny acting batch: exercises the single-tile + batch-padding path.
    key, kx2 = jax.random.split(key)
    B2 = 3
    x2 = jax.random.uniform(kx2, (B2, FEAT), jnp.float32, -1.0, 1.0)
    out2 = jax.block_until_ready(fwd(x2, flat_params))
    assert out2.shape == (B2, FEAT), out2.shape
    ref2 = reference_forward_bf16(x2, params)
    assert jnp.allclose(out2, ref2, atol=2e-3, rtol=2e-3), "mismatch (small batch)"

    print("KERNEL_OK")
</pallas_src>

<mosaic_0001>
module attributes {stable_mosaic.version = 11 : i64} {
  func.func @dqn2_kernel(%arg0: i32, %arg1: memref<32x16xf32, #tpu.memory_space<vmem>>, %arg2: memref<16x256xbf16, #tpu.memory_space<vmem>>, %arg3: memref<256x128xbf16, #tpu.memory_space<vmem>>, %arg4: memref<128x128xbf16, #tpu.memory_space<vmem>>, %arg5: memref<128x64xbf16, #tpu.memory_space<vmem>>, %arg6: memref<64x16xbf16, #tpu.memory_space<vmem>>, %arg7: memref<8x256xf32, #tpu.memory_space<vmem>>, %arg8: memref<32x16xf32, #tpu.memory_space<vmem>>) attributes {dimension_semantics = [#tpu.dimension_semantics<parallel>], iteration_bounds = array<i64: 2>, scalar_prefetch = 0 : i64, scratch_operands = 0 : i64, tpu.core_type = #tpu.core_type<tc>, window_params = [{transform_indices = @transform_0, window_bounds = array<i64: 32, 16>}, {pipeline_mode = #tpu.pipeline_mode<synchronous>, transform_indices = @transform_1, window_bounds = array<i64: 16, 256>}, {pipeline_mode = #tpu.pipeline_mode<synchronous>, transform_indices = @transform_2, window_bounds = array<i64: 256, 128>}, {pipeline_mode = #tpu.pipeline_mode<synchronous>, transform_indices = @transform_3, window_bounds = array<i64: 128, 128>}, {pipeline_mode = #tpu.pipeline_mode<synchronous>, transform_indices = @transform_4, window_bounds = array<i64: 128, 64>}, {pipeline_mode = #tpu.pipeline_mode<synchronous>, transform_indices = @transform_5, window_bounds = array<i64: 64, 16>}, {pipeline_mode = #tpu.pipeline_mode<synchronous>, transform_indices = @transform_6, window_bounds = array<i64: 8, 256>}, {transform_indices = @transform_7, window_bounds = array<i64: 32, 16>}]} {
    %c0 = arith.constant 0 : index
    %c0_0 = arith.constant 0 : index
    %0 = vector.load %arg1[%c0, %c0_0] : memref<32x16xf32, #tpu.memory_space<vmem>>, vector<32x16xf32>
    %1 = arith.truncf %0 : vector<32x16xf32> to vector<32x16xbf16>
    %c0_1 = arith.constant 0 : index
    %c0_2 = arith.constant 0 : index
    %2 = vector.load %arg2[%c0_1, %c0_2] : memref<16x256xbf16, #tpu.memory_space<vmem>>, vector<16x256xbf16>
    %cst = arith.constant dense<0.000000e+00> : vector<32x256xf32>
    %3 = tpu.matmul %1, %2, %cst {dimension_numbers = #tpu.dot_dimension_numbers<[1], [0], [0], [1], [0, 0, 1, 1], [], []>} : vector<32x16xbf16>, vector<16x256xbf16>, vector<32x256xf32> -> vector<32x256xf32>
    %c0_3 = arith.constant 0 : index
    %c0_4 = arith.constant 0 : index
    %4 = vector.load %arg7[%c0_3, %c0_4] : memref<8x256xf32, #tpu.memory_space<vmem>>, vector<1x256xf32>
    %5 = vector.broadcast %4 : vector<1x256xf32> to vector<32x256xf32>
    %6 = arith.addf %3, %5 : vector<32x256xf32>
    %cst_5 = arith.constant 0.000000e+00 : f32
    %7 = vector.broadcast %cst_5 : f32 to vector<32x256xf32>
    %8 = arith.maximumf %6, %7 : vector<32x256xf32>
    %9 = arith.truncf %8 : vector<32x256xf32> to vector<32x256xbf16>
    %c0_6 = arith.constant 0 : index
    %c0_7 = arith.constant 0 : index
    %10 = vector.load %arg3[%c0_6, %c0_7] : memref<256x128xbf16, #tpu.memory_space<vmem>>, vector<256x128xbf16>
    %cst_8 = arith.constant dense<0.000000e+00> : vector<32x128xf32>
    %11 = tpu.matmul %9, %10, %cst_8 {dimension_numbers = #tpu.dot_dimension_numbers<[1], [0], [0], [1], [0, 0, 1, 1], [], []>} : vector<32x256xbf16>, vector<256x128xbf16>, vector<32x128xf32> -> vector<32x128xf32>
    %c1 = arith.constant 1 : index
    %c0_9 = arith.constant 0 : index
    %12 = vector.load %arg7[%c1, %c0_9] : memref<8x256xf32, #tpu.memory_space<vmem>>, vector<1x128xf32>
    %13 = vector.broadcast %12 : vector<1x128xf32> to vector<32x128xf32>
    %14 = arith.addf %11, %13 : vector<32x128xf32>
    %cst_10 = arith.constant 0.000000e+00 : f32
    %15 = vector.broadcast %cst_10 : f32 to vector<32x128xf32>
    %16 = arith.maximumf %14, %15 : vector<32x128xf32>
    %17 = arith.truncf %16 : vector<32x128xf32> to vector<32x128xbf16>
    %c0_11 = arith.constant 0 : index
    %c0_12 = arith.constant 0 : index
    %18 = vector.load %arg4[%c0_11, %c0_12] : memref<128x128xbf16, #tpu.memory_space<vmem>>, vector<128x128xbf16>
    %cst_13 = arith.constant dense<0.000000e+00> : vector<32x128xf32>
    %19 = tpu.matmul %17, %18, %cst_13 {dimension_numbers = #tpu.dot_dimension_numbers<[1], [0], [0], [1], [0, 0, 1, 1], [], []>} : vector<32x128xbf16>, vector<128x128xbf16>, vector<32x128xf32> -> vector<32x128xf32>
    %c2 = arith.constant 2 : index
    %c0_14 = arith.constant 0 : index
    %20 = vector.load %arg7[%c2, %c0_14] : memref<8x256xf32, #tpu.memory_space<vmem>>, vector<1x128xf32>
    %21 = vector.broadcast %20 : vector<1x128xf32> to vector<32x128xf32>
    %22 = arith.addf %19, %21 : vector<32x128xf32>
    %cst_15 = arith.constant 0.000000e+00 : f32
    %23 = vector.broadcast %cst_15 : f32 to vector<32x128xf32>
    %24 = arith.maximumf %22, %23 : vector<32x128xf32>
    %25 = arith.truncf %24 : vector<32x128xf32> to vector<32x128xbf16>
    %c0_16 = arith.constant 0 : index
    %c0_17 = arith.constant 0 : index
    %26 = vector.load %arg5[%c0_16, %c0_17] : memref<128x64xbf16, #tpu.memory_space<vmem>>, vector<128x64xbf16>
    %cst_18 = arith.constant dense<0.000000e+00> : vector<32x64xf32>
    %27 = tpu.matmul %25, %26, %cst_18 {dimension_numbers = #tpu.dot_dimension_numbers<[1], [0], [0], [1], [0, 0, 1, 1], [], []>} : vector<32x128xbf16>, vector<128x64xbf16>, vector<32x64xf32> -> vector<32x64xf32>
    %c3 = arith.constant 3 : index
    %c0_19 = arith.constant 0 : index
    %28 = vector.load %arg7[%c3, %c0_19] : memref<8x256xf32, #tpu.memory_space<vmem>>, vector<1x64xf32>
    %29 = vector.broadcast %28 : vector<1x64xf32> to vector<32x64xf32>
    %30 = arith.addf %27, %29 : vector<32x64xf32>
    %cst_20 = arith.constant 0.000000e+00 : f32
    %31 = vector.broadcast %cst_20 : f32 to vector<32x64xf32>
    %32 = arith.maximumf %30, %31 : vector<32x64xf32>
    %33 = arith.truncf %32 : vector<32x64xf32> to vector<32x64xbf16>
    %c0_21 = arith.constant 0 : index
    %c0_22 = arith.constant 0 : index
    %34 = vector.load %arg6[%c0_21, %c0_22] : memref<64x16xbf16, #tpu.memory_space<vmem>>, vector<64x16xbf16>
    %cst_23 = arith.constant dense<0.000000e+00> : vector<32x16xf32>
    %35 = tpu.matmul %33, %34, %cst_23 {dimension_numbers = #tpu.dot_dimension_numbers<[1], [0], [0], [1], [0, 0, 1, 1], [], []>} : vector<32x64xbf16>, vector<64x16xbf16>, vector<32x16xf32> -> vector<32x16xf32>
    %c4 = arith.constant 4 : index
    %c0_24 = arith.constant 0 : index
    %36 = vector.load %arg7[%c4, %c0_24] : memref<8x256xf32, #tpu.memory_space<vmem>>, vector<1x16xf32>
    %37 = vector.broadcast %36 : vector<1x16xf32> to vector<32x16xf32>
    %38 = arith.addf %35, %37 : vector<32x16xf32>
    %c0_25 = arith.constant 0 : index
    %c0_26 = arith.constant 0 : index
    %39 = vector.load %arg8[%c0_25, %c0_26] : memref<32x16xf32, #tpu.memory_space<vmem>>, vector<32x16xf32>
    tpu.vector_store %arg8[%c0_25, %c0_26], %38 {strides = array<i32>} : memref<32x16xf32, #tpu.memory_space<vmem>>, vector<32x16xf32>,
    return
  }
  func.func @transform_0(%arg0: i32) -> (i32, i32) {
    %c0_i32 = arith.constant 0 : i32
    %c0_i32_0 = arith.constant 0 : i32
    return %arg0, %c0_i32 : i32, i32
  }
  func.func @transform_1(%arg0: i32) -> (i32, i32) {
    %c0_i32 = arith.constant 0 : i32
    %c0_i32_0 = arith.constant 0 : i32
    %c0_i32_1 = arith.constant 0 : i32
    return %c0_i32, %c0_i32_0 : i32, i32
  }
  func.func @transform_2(%arg0: i32) -> (i32, i32) {
    %c0_i32 = arith.constant 0 : i32
    %c0_i32_0 = arith.constant 0 : i32
    %c0_i32_1 = arith.constant 0 : i32
    return %c0_i32, %c0_i32_0 : i32, i32
  }
  func.func @transform_3(%arg0: i32) -> (i32, i32) {
    %c0_i32 = arith.constant 0 : i32
    %c0_i32_0 = arith.constant 0 : i32
    %c0_i32_1 = arith.constant 0 : i32
    return %c0_i32, %c0_i32_0 : i32, i32
  }
  func.func @transform_4(%arg0: i32) -> (i32, i32) {
    %c0_i32 = arith.constant 0 : i32
    %c0_i32_0 = arith.constant 0 : i32
    %c0_i32_1 = arith.constant 0 : i32
    return %c0_i32, %c0_i32_0 : i32, i32
  }
  func.func @transform_5(%arg0: i32) -> (i32, i32) {
    %c0_i32 = arith.constant 0 : i32
    %c0_i32_0 = arith.constant 0 : i32
    %c0_i32_1 = arith.constant 0 : i32
    return %c0_i32, %c0_i32_0 : i32, i32
  }
  func.func @transform_6(%arg0: i32) -> (i32, i32) {
    %c0_i32 = arith.constant 0 : i32
    %c0_i32_0 = arith.constant 0 : i32
    %c0_i32_1 = arith.constant 0 : i32
    return %c0_i32, %c0_i32_0 : i32, i32
  }
  func.func @transform_7(%arg0: i32) -> (i32, i32) {
    %c0_i32 = arith.constant 0 : i32
    %c0_i32_0 = arith.constant 0 : i32
    return %arg0, %c0_i32 : i32, i32
  }
}

</mosaic_0001>

<llo_original>
// kernel: dqn2_forward.1
$region0: #{dqn2_forward.1}
  #allocation0 [shape = 'u32[]', space=smem, size = 0x4, offset = 0x4, fixed_abs, tag = 'smem constant byte address 0x4 - core index']
  #allocation1 [shape = 'u32[144,128]{1,0:T(1,128)}', space=vmem, size = 0x12000, scoped, tag = 'internal scratch']
  %s0 = inlined_call_operand.vmem [shape: f32[64,16], index: 0, kind: input, shape index: {}]
  %s1 = inlined_call_operand.vmem [shape: bf16[16,256], index: 1, kind: input, shape index: {}]
  %s2 = inlined_call_operand.vmem [shape: bf16[256,128], index: 2, kind: input, shape index: {}]
  %s3 = inlined_call_operand.vmem [shape: bf16[128,128], index: 3, kind: input, shape index: {}]
  %s4 = inlined_call_operand.vmem [shape: bf16[128,64], index: 4, kind: input, shape index: {}]
  %s5 = inlined_call_operand.vmem [shape: bf16[64,16], index: 5, kind: input, shape index: {}]
  %s6 = inlined_call_operand.vmem [shape: f32[8,256], index: 6, kind: input, shape index: {}]
  %s7 = inlined_call_operand.vmem [shape: f32[64,16], index: 7, kind: output, shape index: {}]
  %s8 = sld [smem:[#allocation0]]
  $region61: #{dqn2_forward.1} parent=0
    _
  %s10 = ssub.s32 1, %s8
  %s11 = scalar_select 0, %s10, %s8
  loop: start=0, step=1, limit=4
  $region2: #{dqn2_forward.1} parent=0 // loop_pre_header
    _
  $region3: #{dqn2_forward.1} parent=0 // loop_header
    %s13 = sphi 0, %s17
    %p14 = scmp.ge.s32.totalorder %s13, 4
    %s23 = sphi 0, %s25
    %s26 = sphi 0, %s23
    %s27 = sphi 0, %s26
    %s43 = sphi 0, %s27
    %s47 = sphi 0, %s47
    %s49 = sphi 0, %s47
    %s50 = sphi 0, %s49
    %s64 = sphi 0, %s50
    %s68 = sphi 0, %s68
    %s70 = sphi 0, %s68
    %s71 = sphi 0, %s70
    %s85 = sphi 0, %s71
    %s89 = sphi 0, %s89
    %s91 = sphi 0, %s89
    %s92 = sphi 0, %s91
    %s106 = sphi 0, %s92
    %s110 = sphi 0, %s110
    %s112 = sphi 0, %s110
    %s113 = sphi 0, %s112
    %s127 = sphi 0, %s113
    %s131 = sphi 0, %s131
    %s133 = sphi 0, %s131
    %s134 = sphi 0, %s133
    %s148 = sphi 0, %s134
    %s152 = sphi 0, %s152
    %s154 = sphi 0, %s152
    %s155 = sphi 0, %s154
    %s169 = sphi 0, %s155
    %s175 = sphi 0, %s177
    %s178 = sphi 0, %s175
    %s179 = sphi 0, %s178
    %s195 = sphi 0, %s179
  $region4: #{dqn2_forward.1} parent=0 // loop_header_branch
    %16 = sbr.rel (%p14) target = $region8
  $region5: #{dqn2_forward.1} parent=0 // loop_body
    %s18 = ssub.s32 %s13, 1
    %s19 = ssub.s32 %s13, 2
    %s20 = sadd.s32 %s13, 1
    %s21 = ssub.s32 %s13, %s20
    %p22 = scmp.eq.s32.totalorder %s21, 0
    %s24 = sadd.s32 %s23, 1
    %s25 = scalar_select %p22, %s23, %s24
    %p28 = pneg %p22
    %p29 = scmp.eq.s32.totalorder %s13, 1
    %p30 = por %p28, %p29
    %p31 = scmp.ne.s32.totalorder %s23, %s26
    %p32 = scmp.eq.s32.totalorder %s13, 0
    %p33 = por %p31, %p32
    %p34 = scmp.ne.s32.totalorder %s23, %s26
    %p35 = scmp.eq.s32.totalorder %s18, 1
    %p36 = por %p34, %p35
    %p37 = scmp.ne.s32.totalorder %s26, %s27
    %p38 = scmp.eq.s32.totalorder %s18, 0
    %p39 = por %p37, %p38
    %p40 = scmp.ne.s32.totalorder %s26, %s27
    %p41 = scmp.eq.s32.totalorder %s19, 1
    %p42 = por %p40, %p41
    %p44 = scmp.ne.s32.totalorder %s27, %s43
    %p45 = scmp.eq.s32.totalorder %s19, 0
    %p46 = por %p44, %p45
    %s48 = sadd.s32 %s47, 1
    %p51 = scmp.eq.s32.totalorder %s13, 1
    %p52 = scmp.ne.s32.totalorder %s47, %s49
    %p53 = scmp.eq.s32.totalorder %s13, 0
    %p54 = por %p52, %p53
    %p55 = scmp.ne.s32.totalorder %s47, %s49
    %p56 = scmp.eq.s32.totalorder %s18, 1
    %p57 = por %p55, %p56
    %p58 = scmp.ne.s32.totalorder %s49, %s50
    %p59 = scmp.eq.s32.totalorder %s18, 0
    %p60 = por %p58, %p59
    %p61 = scmp.ne.s32.totalorder %s49, %s50
    %p62 = scmp.eq.s32.totalorder %s19, 1
    %p63 = por %p61, %p62
    %p65 = scmp.ne.s32.totalorder %s50, %s64
    %p66 = scmp.eq.s32.totalorder %s19, 0
    %p67 = por %p65, %p66
    %s69 = sadd.s32 %s68, 1
    %p72 = scmp.eq.s32.totalorder %s13, 1
    %p73 = scmp.ne.s32.totalorder %s68, %s70
    %p74 = scmp.eq.s32.totalorder %s13, 0
    %p75 = por %p73, %p74
    %p76 = scmp.ne.s32.totalorder %s68, %s70
    %p77 = scmp.eq.s32.totalorder %s18, 1
    %p78 = por %p76, %p77
    %p79 = scmp.ne.s32.totalorder %s70, %s71
    %p80 = scmp.eq.s32.totalorder %s18, 0
    %p81 = por %p79, %p80
    %p82 = scmp.ne.s32.totalorder %s70, %s71
    %p83 = scmp.eq.s32.totalorder %s19, 1
    %p84 = por %p82, %p83
    %p86 = scmp.ne.s32.totalorder %s71, %s85
    %p87 = scmp.eq.s32.totalorder %s19, 0
    %p88 = por %p86, %p87
    %s90 = sadd.s32 %s89, 1
    %p93 = scmp.eq.s32.totalorder %s13, 1
    %p94 = scmp.ne.s32.totalorder %s89, %s91
    %p95 = scmp.eq.s32.totalorder %s13, 0
    %p96 = por %p94, %p95
    %p97 = scmp.ne.s32.totalorder %s89, %s91
    %p98 = scmp.eq.s32.totalorder %s18, 1
    %p99 = por %p97, %p98
    %p100 = scmp.ne.s32.totalorder %s91, %s92
    %p101 = scmp.eq.s32.totalorder %s18, 0
    %p102 = por %p100, %p101
    %p103 = scmp.ne.s32.totalorder %s91, %s92
    %p104 = scmp.eq.s32.totalorder %s19, 1
    %p105 = por %p103, %p104
    %p107 = scmp.ne.s32.totalorder %s92, %s106
    %p108 = scmp.eq.s32.totalorder %s19, 0
    %p109 = por %p107, %p108
    %s111 = sadd.s32 %s110, 1
    %p114 = scmp.eq.s32.totalorder %s13, 1
    %p115 = scmp.ne.s32.totalorder %s110, %s112
    %p116 = scmp.eq.s32.totalorder %s13, 0
    %p117 = por %p115, %p116
    %p118 = scmp.ne.s32.totalorder %s110, %s112
    %p119 = scmp.eq.s32.totalorder %s18, 1
    %p120 = por %p118, %p119
    %p121 = scmp.ne.s32.totalorder %s112, %s113
    %p122 = scmp.eq.s32.totalorder %s18, 0
    %p123 = por %p121, %p122
    %p124 = scmp.ne.s32.totalorder %s112, %s113
    %p125 = scmp.eq.s32.totalorder %s19, 1
    %p126 = por %p124, %p125
    %p128 = scmp.ne.s32.totalorder %s113, %s127
    %p129 = scmp.eq.s32.totalorder %s19, 0
    %p130 = por %p128, %p129
    %s132 = sadd.s32 %s131, 1
    %p135 = scmp.eq.s32.totalorder %s13, 1
    %p136 = scmp.ne.s32.totalorder %s131, %s133
    %p137 = scmp.eq.s32.totalorder %s13, 0
    %p138 = por %p136, %p137
    %p139 = scmp.ne.s32.totalorder %s131, %s133
    %p140 = scmp.eq.s32.totalorder %s18, 1
    %p141 = por %p139, %p140
    %p142 = scmp.ne.s32.totalorder %s133, %s134
    %p143 = scmp.eq.s32.totalorder %s18, 0
    %p144 = por %p142, %p143
    %p145 = scmp.ne.s32.totalorder %s133, %s134
    %p146 = scmp.eq.s32.totalorder %s19, 1
    %p147 = por %p145, %p146
    %p149 = scmp.ne.s32.totalorder %s134, %s148
    %p150 = scmp.eq.s32.totalorder %s19, 0
    %p151 = por %p149, %p150
    %s153 = sadd.s32 %s152, 1
    %p156 = scmp.eq.s32.totalorder %s13, 1
    %p157 = scmp.ne.s32.totalorder %s152, %s154
    %p158 = scmp.eq.s32.totalorder %s13, 0
    %p159 = por %p157, %p158
    %p160 = scmp.ne.s32.totalorder %s152, %s154
    %p161 = scmp.eq.s32.totalorder %s18, 1
    %p162 = por %p160, %p161
    %p163 = scmp.ne.s32.totalorder %s154, %s155
    %p164 = scmp.eq.s32.totalorder %s18, 0
    %p165 = por %p163, %p164
    %p166 = scmp.ne.s32.totalorder %s154, %s155
    %p167 = scmp.eq.s32.totalorder %s19, 1
    %p168 = por %p166, %p167
    %p170 = scmp.ne.s32.totalorder %s155, %s169
    %p171 = scmp.eq.s32.totalorder %s19, 0
    %p172 = por %p170, %p171
    %s173 = ssub.s32 %s13, %s20
    %p174 = scmp.eq.s32.totalorder %s173, 0
    %s176 = sadd.s32 %s175, 1
    %s177 = scalar_select %p174, %s175, %s176
    %p180 = pneg %p174
    %p181 = scmp.eq.s32.totalorder %s13, 1
    %p182 = por %p180, %p181
    %p183 = scmp.ne.s32.totalorder %s175, %s178
    %p184 = scmp.eq.s32.totalorder %s13, 0
    %p185 = por %p183, %p184
    %p186 = scmp.ne.s32.totalorder %s175, %s178
    %p187 = scmp.eq.s32.totalorder %s18, 1
    %p188 = por %p186, %p187
    %p189 = scmp.ne.s32.totalorder %s178, %s179
    %p190 = scmp.eq.s32.totalorder %s18, 0
    %p191 = por %p189, %p190
    %p192 = scmp.ne.s32.totalorder %s178, %s179
    %p193 = scmp.eq.s32.totalorder %s19, 1
    %p194 = por %p192, %p193
    %p196 = scmp.ne.s32.totalorder %s179, %s195
    %p197 = scmp.eq.s32.totalorder %s19, 0
    %p198 = por %p196, %p197
    %p199 = scmp.le.s32.totalorder 1, %s13
    %p200 = scmp.lt.s32.totalorder %s13, 3
    %p201 = pnand %p199, %p200
    %p202 = pneg %p201
    // Predicated region
    $region9: #{dqn2_forward.1} parent=5 // pred_check
      _
    $region10: #{dqn2_forward.1} parent=5 // pred_check_branch
      %204 = sbr.rel (%p201) target = $region12
    $region11: #{dqn2_forward.1} parent=5 // pred_region
      %s205 = ssub.s32 %s13, 1
      // Predicated region
      $region13: #{dqn2_forward.1} parent=11 // pred_check
        %p206 = pneg %p60
      $region14: #{dqn2_forward.1} parent=11 // pred_check_branch
        %208 = sbr.rel (%p206) target = $region16
      $region15: #{dqn2_forward.1} parent=11 // pred_region
        _
      $region16: #{dqn2_forward.1} parent=11 // pred_fallthru
        _
      // Predicated region
      $region17: #{dqn2_forward.1} parent=11 // pred_check
        %p209 = pneg %p81
      $region18: #{dqn2_forward.1} parent=11 // pred_check_branch
        %211 = sbr.rel (%p209) target = $region20
      $region19: #{dqn2_forward.1} parent=11 // pred_region
        _
      $region20: #{dqn2_forward.1} parent=11 // pred_fallthru
        _
      // Predicated region
      $region21: #{dqn2_forward.1} parent=11 // pred_check
        %p212 = pneg %p102
      $region22: #{dqn2_forward.1} parent=11 // pred_check_branch
        %214 = sbr.rel (%p212) target = $region24
      $region23: #{dqn2_forward.1} parent=11 // pred_region
        _
      $region24: #{dqn2_forward.1} parent=11 // pred_fallthru
        _
      // Predicated region
      $region25: #{dqn2_forward.1} parent=11 // pred_check
        %p215 = pneg %p123
      $region26: #{dqn2_forward.1} parent=11 // pred_check_branch
        %217 = sbr.rel (%p215) target = $region28
      $region27: #{dqn2_forward.1} parent=11 // pred_region
        _
      $region28: #{dqn2_forward.1} parent=11 // pred_fallthru
        _
      // Predicated region
      $region29: #{dqn2_forward.1} parent=11 // pred_check
        %p218 = pneg %p144
      $region30: #{dqn2_forward.1} parent=11 // pred_check_branch
        %220 = sbr.rel (%p218) target = $region32
      $region31: #{dqn2_forward.1} parent=11 // pred_region
        _
      $region32: #{dqn2_forward.1} parent=11 // pred_fallthru
        _
      // Predicated region
      $region33: #{dqn2_forward.1} parent=11 // pred_check
        %p221 = pneg %p165
      $region34: #{dqn2_forward.1} parent=11 // pred_check_branch
        %223 = sbr.rel (%p221) target = $region36
      $region35: #{dqn2_forward.1} parent=11 // pred_region
        _
      $region36: #{dqn2_forward.1} parent=11 // pred_fallthru
        _
    $region12: #{dqn2_forward.1} parent=5 // pred_fallthru
      _
    %p224 = scmp.lt.s32.totalorder %s13, 2
    // Predicated region
    $region37: #{dqn2_forward.1} parent=5 // pred_check
      %p225 = pneg %p224
    $region38: #{dqn2_forward.1} parent=5 // pred_check_branch
      %227 = sbr.rel (%p225) target = $region40
    $region39: #{dqn2_forward.1} parent=5 // pred_region
      // Predicated region
      $region41: #{dqn2_forward.1} parent=39 // pred_check
        %p228 = pneg %p33
      $region42: #{dqn2_forward.1} parent=39 // pred_check_branch
        %230 = sbr.rel (%p228) target = $region44
      $region43: #{dqn2_forward.1} parent=39 // pred_region
        %s231 = smul.u32 4, %s13
        %p232 = scmp.lt.s32.totalorder %s231, 7
        %s233 = scalar_select %p232, %s231, 7
        %s234 = smul.addr %s233, 8
        %s235 = scalar_lea.vmem %s0, %s234
        %s236 = smul.u32 4, %s13
      $region44: #{dqn2_forward.1} parent=39 // pred_fallthru
        _
    $region40: #{dqn2_forward.1} parent=5 // pred_fallthru
      _
    %p237 = scmp.le.s32.totalorder 1, %s13
    %p238 = scmp.lt.s32.totalorder %s13, 3
    %p239 = pnand %p237, %p238
    %p240 = pneg %p239
    // Predicated region
    $region45: #{dqn2_forward.1} parent=5 // pred_check
      _
    $region46: #{dqn2_forward.1} parent=5 // pred_check_branch
      %242 = sbr.rel (%p239) target = $region48
    $region47: #{dqn2_forward.1} parent=5 // pred_region
      %s243 = ssub.s32 %s13, 1
      %s244 = smul.u32 4, %s18
      %p245 = scmp.lt.s32.totalorder %s244, 7
      %s246 = scalar_select %p245, %s244, 7
      %s247 = smul.addr %s246, 8
      %s248 = scalar_lea.vmem %s0, %s247
      %p249 = pneg %p39
      %p250 = pneg %p36
      %p251 = pneg %p60
      %p252 = pneg %p57
      %p253 = pneg %p81
      %p254 = pneg %p78
      %p255 = pneg %p102
      %p256 = pneg %p99
      %p257 = pneg %p123
      %p258 = pneg %p120
      %p259 = pneg %p144
      %p260 = pneg %p141
      %p261 = pneg %p165
      %p262 = pneg %p162
      %p263 = pneg %p191
      %p264 = pneg %p188
      %s265 = smul.u32 4, %s18
      %p266 = scmp.lt.s32.totalorder %s265, 7
      %s267 = scalar_select %p266, %s265, 7
      %s268 = smul.addr %s267, 8
      %s269 = scalar_lea.vmem %s7, %s268
      %s270 = smul.u32 4, %s18
      %p271 = scmp.lt.s32.totalorder %s270, 7
      %s272 = scalar_select %p271, %s270, 7
      %s273 = smul.addr %s272, 8
      %s274 = scalar_lea.vmem %s0, %s273
      %s275 = smul.u32 4, %s18
      %s276 = smul.u32 4, %s18
      %p277 = scmp.lt.s32.totalorder %s276, 7
      %s278 = scalar_select %p277, %s276, 7
      %s279 = smul.addr %s278, 8
      %s280 = scalar_lea.vmem %s7, %s279
      %s281 = smul.u32 4, %s18
      %v283 = vld [vmem:[%s274] sm:$0xff]
      %v284 = vld [vmem:[%s274 + $0x8] sm:$0xff]
      %v285 = vld [vmem:[%s274 + $0x10] sm:$0xff]
      %v286 = vld [vmem:[%s274 + $0x18] sm:$0xff]
      %v287 = vpack.c.bf16 %v284, %v283
      %v288 = vpack.c.bf16 %v286, %v285
      %v289 = vld [vmem:[%s1] sm:$0xff]
      %v290 = vld [vmem:[%s1 + $0x8] sm:$0xff]
      %v291 = vld [vmem:[%s6] ss:$8 sm:$0x3]
      %v293 = vlaneseq
      %v294 = vshrl.u32 %v293, 7
      %v295 = vsub.s32 0, %v294
      %v296 = vrot.slane %v291, %v295
      %v297 = vlaneseq
      %v298 = vshrl.u32 %v297, 7
      %v299 = vsub.s32 1, %v298
      %v300 = vrot.slane %v291, %v299
      %v305 = vunpack.c.l.b16 %v289
      %v306 = vunpack.c.h.b16 %v289
      %v307 = vunpack.c.l.b16 %v290
      %v308 = vunpack.c.h.b16 %v290
      %v309 = vpack.c.b16 %v307, %v305
      %v310 = vpack.c.b16 %v308, %v306
      %vm313 = vcmask 130048
      %v315 = vsel %vm313, %v287, 0
      %v318 = vsel %vm313, %v288, 0
      %320 = vmatprep.subr.bf16.mxu0 %v310
      %321 = vmatpush1.bf16.msra.mxu0 %v309
      %322 = vmatprep.subr.bf16.mxu0 0
      %323 = vmatpush1.bf16.msra.mxu0 0
      %324 = vmatprep.subr.bf16.mxu0 0
      %325 = vmatpush1.bf16.msra.mxu0 0
      %326 = vmatprep.subr.bf16.mxu0 0
      %327 = vmatpush1.bf16.msra.mxu0 0
      %328 = vmatprep.subr.bf16.mxu0 0
      %329 = vmatpush1.bf16.msra.mxu0 0
      %330 = vmatprep.subr.bf16.mxu0 0
      %331 = vmatpush1.bf16.msra.mxu0 0
      %332 = vmatprep.subr.bf16.mxu0 0
      %333 = vmatpush1.bf16.msra.mxu0 0
      %334 = vmatprep.subr.bf16.mxu0 0
      %335 = vmatpush1.bf16.msra.mxu0 0
      %336 = vmatprep.subr.bf16.mxu0 0
      %337 = vmatpush1.bf16.msra.mxu0 0
      %338 = vmatprep.subr.bf16.mxu0 0
      %339 = vmatpush1.bf16.msra.mxu0 0
      %340 = vmatprep.subr.bf16.mxu0 0
      %341 = vmatpush1.bf16.msra.mxu0 0
      %342 = vmatprep.subr.bf16.mxu0 0
      %343 = vmatpush1.bf16.msra.mxu0 0
      %344 = vmatprep.subr.bf16.mxu0 0
      %345 = vmatpush1.bf16.msra.mxu0 0
      %346 = vmatprep.subr.bf16.mxu0 0
      %347 = vmatpush1.bf16.msra.mxu0 0
      %348 = vmatprep.subr.bf16.mxu0 0
      %349 = vmatpush1.bf16.msra.mxu0 0
      %350 = vmatprep.subr.bf16.mxu0 0
      %351 = vmatpush1.bf16.msra.mxu0 0
      %352 = vmatprep.mubr.bf16.mxu0 0
      %353 = vmatmul.mubr.bf16.gmra.mrb[0].mxu0 %v315
      %v354 = vpop.f32.mrb[0].mxu0
      %v355 = vadd.f32 %v296, %v354
      %v356 = vpop.f32.mrb[0].mxu0
      %v357 = vadd.f32 %v300, %v356
      %v358 = vpop.f32.mrb[0].mxu0
      %v359 = vadd.f32 %v296, %v358
      %v360 = vpop.f32.mrb[0].mxu0
      %v361 = vadd.f32 %v300, %v360
      %362 = vmatprep.mubr.bf16.mxu0 0
      %363 = vmatmul.mubr.bf16.gmra.mrb[0].mxu0 %v318
      %v364 = vpop.f32.mrb[0].mxu0
      %v365 = vadd.f32 %v296, %v364
      %v366 = vpop.f32.mrb[0].mxu0
      %v367 = vadd.f32 %v300, %v366
      %v368 = vpop.f32.mrb[0].mxu0
      %v369 = vadd.f32 %v296, %v368
      %v370 = vpop.f32.mrb[0].mxu0
      %v371 = vadd.f32 %v300, %v370
      %372 = vdwg.mxu0
      %v373 = vmax.f32 %v355, 0.0
      %v374 = vmax.f32 %v357, 0.0
      %v375 = vmax.f32 %v359, 0.0
      %v376 = vmax.f32 %v361, 0.0
      %v377 = vmax.f32 %v365, 0.0
      %v378 = vmax.f32 %v367, 0.0
      %v379 = vmax.f32 %v369, 0.0
      %v380 = vmax.f32 %v371, 0.0
      %v381 = vpack.c.bf16 %v375, %v373
      %v382 = vpack.c.bf16 %v376, %v374
      %v383 = vpack.c.bf16 %v379, %v377
      %v384 = vpack.c.bf16 %v380, %v378
      %v385 = vld [vmem:[%s2] sm:$0xf]
      %v386 = vld [vmem:[%s2 + $0x4] sm:$0xf]
      %v387 = vld [vmem:[%s2 + $0x8] sm:$0xf]
      %v388 = vld [vmem:[%s2 + $0xc] sm:$0xf]
      %v389 = vld [vmem:[%s2 + $0x10] sm:$0xf]
      %v390 = vld [vmem:[%s2 + $0x14] sm:$0xf]
      %v391 = vld [vmem:[%s2 + $0x18] sm:$0xf]
      %v392 = vld [vmem:[%s2 + $0x1c] sm:$0xf]
      %v393 = vld [vmem:[%s2 + $0x20] sm:$0xf]
      %v394 = vld [vmem:[%s2 + $0x24] sm:$0xf]
      %v395 = vld [vmem:[%s2 + $0x28] sm:$0xf]
      %v396 = vld [vmem:[%s2 + $0x2c] sm:$0xf]
      %v397 = vld [vmem:[%s2 + $0x30] sm:$0xf]
      %v398 = vld [vmem:[%s2 + $0x34] sm:$0xf]
      %v399 = vld [vmem:[%s2 + $0x38] sm:$0xf]
      %v400 = vld [vmem:[%s2 + $0x3c] sm:$0xf]
      %v401 = vld [vmem:[%s2 + $0x40] sm:$0xf]
      %v402 = vld [vmem:[%s2 + $0x44] sm:$0xf]
      %v403 = vld [vmem:[%s2 + $0x48] sm:$0xf]
      %v404 = vld [vmem:[%s2 + $0x4c] sm:$0xf]
      %v405 = vld [vmem:[%s2 + $0x50] sm:$0xf]
      %v406 = vld [vmem:[%s2 + $0x54] sm:$0xf]
      %v407 = vld [vmem:[%s2 + $0x58] sm:$0xf]
      %v408 = vld [vmem:[%s2 + $0x5c] sm:$0xf]
      %v409 = vld [vmem:[%s2 + $0x60] sm:$0xf]
      %v410 = vld [vmem:[%s2 + $0x64] sm:$0xf]
      %v411 = vld [vmem:[%s2 + $0x68] sm:$0xf]
      %v412 = vld [vmem:[%s2 + $0x6c] sm:$0xf]
      %v413 = vld [vmem:[%s2 + $0x70] sm:$0xf]
      %v414 = vld [vmem:[%s2 + $0x74] sm:$0xf]
      %v415 = vld [vmem:[%s2 + $0x78] sm:$0xf]
      %v416 = vld [vmem:[%s2 + $0x7c] sm:$0xf]
      %v417 = vld [vmem:[%s6 + $0x1] ss:$0 sm:$0xff]
      %v450 = vunpack.c.l.b16 %v385
      %v451 = vunpack.c.l.b16 %v386
      %v452 = vunpack.c.l.b16 %v387
      %v453 = vunpack.c.l.b16 %v388
      %v454 = vunpack.c.l.b16 %v389
      %v455 = vunpack.c.l.b16 %v390
      %v456 = vunpack.c.l.b16 %v391
      %v457 = vunpack.c.l.b16 %v392
      %v458 = vunpack.c.l.b16 %v393
      %v459 = vunpack.c.l.b16 %v394
      %v460 = vunpack.c.l.b16 %v395
      %v461 = vunpack.c.l.b16 %v396
      %v462 = vunpack.c.l.b16 %v397
      %v463 = vunpack.c.l.b16 %v398
      %v464 = vunpack.c.l.b16 %v399
      %v465 = vunpack.c.l.b16 %v400
      %v466 = vunpack.c.l.b16 %v401
      %v467 = vunpack.c.l.b16 %v402
      %v468 = vunpack.c.l.b16 %v403
      %v469 = vunpack.c.l.b16 %v404
      %v470 = vunpack.c.l.b16 %v405
      %v471 = vunpack.c.l.b16 %v406
      %v472 = vunpack.c.l.b16 %v407
      %v473 = vunpack.c.l.b16 %v408
      %v474 = vunpack.c.l.b16 %v409
      %v475 = vunpack.c.l.b16 %v410
      %v476 = vunpack.c.l.b16 %v411
      %v477 = vunpack.c.l.b16 %v412
      %v478 = vunpack.c.l.b16 %v413
      %v479 = vunpack.c.l.b16 %v414
      %v480 = vunpack.c.l.b16 %v415
      %v481 = vunpack.c.l.b16 %v416
      %v482 = vpack.c.b16 %v451, %v450
      %v483 = vpack.c.b16 %v453, %v452
      %v484 = vpack.c.b16 %v455, %v454
      %v485 = vpack.c.b16 %v457, %v456
      %v486 = vpack.c.b16 %v459, %v458
      %v487 = vpack.c.b16 %v461, %v460
      %v488 = vpack.c.b16 %v463, %v462
      %v489 = vpack.c.b16 %v465, %v464
      %v490 = vpack.c.b16 %v467, %v466
      %v491 = vpack.c.b16 %v469, %v468
      %v492 = vpack.c.b16 %v471, %v470
      %v493 = vpack.c.b16 %v473, %v472
      %v494 = vpack.c.b16 %v475, %v474
      %v495 = vpack.c.b16 %v477, %v476
      %v496 = vpack.c.b16 %v479, %v478
      %v497 = vpack.c.b16 %v481, %v480
      %514 = vmatprep.subr.bf16.mxu0 0
      %515 = vmatpush1.bf16.msra.mxu0 %v482
      %516 = vmatprep.subr.bf16.mxu0 0
      %517 = vmatpush1.bf16.msra.mxu0 %v483
      %518 = vmatprep.subr.bf16.mxu0 0
      %519 = vmatpush1.bf16.msra.mxu0 %v484
      %520 = vmatprep.subr.bf16.mxu0 0
      %521 = vmatpush1.bf16.msra.mxu0 %v485
      %522 = vmatprep.subr.bf16.mxu0 0
      %523 = vmatpush1.bf16.msra.mxu0 %v486
      %524 = vmatprep.subr.bf16.mxu0 0
      %525 = vmatpush1.bf16.msra.mxu0 %v487
      %526 = vmatprep.subr.bf16.mxu0 0
      %527 = vmatpush1.bf16.msra.mxu0 %v488
      %528 = vmatprep.subr.bf16.mxu0 0
      %529 = vmatpush1.bf16.msra.mxu0 %v489
      %530 = vmatprep.subr.bf16.mxu0 0
      %531 = vmatpush1.bf16.msra.mxu0 %v490
      %532 = vmatprep.subr.bf16.mxu0 0
      %533 = vmatpush1.bf16.msra.mxu0 %v491
      %534 = vmatprep.subr.bf16.mxu0 0
      %535 = vmatpush1.bf16.msra.mxu0 %v492
      %536 = vmatprep.subr.bf16.mxu0 0
      %537 = vmatpush1.bf16.msra.mxu0 %v493
      %538 = vmatprep.subr.bf16.mxu0 0
      %539 = vmatpush1.bf16.msra.mxu0 %v494
      %540 = vmatprep.subr.bf16.mxu0 0
      %541 = vmatpush1.bf16.msra.mxu0 %v495
      %542 = vmatprep.subr.bf16.mxu0 0
      %543 = vmatpush1.bf16.msra.mxu0 %v496
      %544 = vmatprep.subr.bf16.mxu0 0
      %545 = vmatpush1.bf16.msra.mxu0 %v497
      %546 = vmatprep.mubr.bf16.mxu0 %v382
      %547 = vmatmul.mubr.bf16.gmra.mrb[0].mxu0 %v381
      %v548 = vpop.f32.mrb[0].mxu0
      %v549 = vadd.f32 %v417, %v548
      %v550 = vpop.f32.mrb[0].mxu0
      %v551 = vpop.f32.mrb[0].mxu0
      %v552 = vadd.f32 %v417, %v551
      %v553 = vpop.f32.mrb[0].mxu0
      %554 = vmatprep.mubr.bf16.mxu0 %v384
      %555 = vmatmul.mubr.bf16.gmra.mrb[0].mxu0 %v383
      %v556 = vpop.f32.mrb[0].mxu0
      %v557 = vadd.f32 %v417, %v556
      %v558 = vpop.f32.mrb[0].mxu0
      %v559 = vpop.f32.mrb[0].mxu0
      %v560 = vadd.f32 %v417, %v559
      %v561 = vpop.f32.mrb[0].mxu0
      %562 = vdwg.mxu0
      %v563 = vmax.f32 %v549, 0.0
      %v564 = vmax.f32 %v552, 0.0
      %v565 = vmax.f32 %v557, 0.0
      %v566 = vmax.f32 %v560, 0.0
      %v567 = vpack.c.bf16 %v564, %v563
      %v568 = vpack.c.bf16 %v566, %v565
      %v569 = vld [vmem:[%s3] sm:$0xf]
      %v570 = vld [vmem:[%s3 + $0x4] sm:$0xf]
      %v571 = vld [vmem:[%s3 + $0x8] sm:$0xf]
      %v572 = vld [vmem:[%s3 + $0xc] sm:$0xf]
      %v573 = vld [vmem:[%s3 + $0x10] sm:$0xf]
      %v574 = vld [vmem:[%s3 + $0x14] sm:$0xf]
      %v575 = vld [vmem:[%s3 + $0x18] sm:$0xf]
      %v576 = vld [vmem:[%s3 + $0x1c] sm:$0xf]
      %v577 = vld [vmem:[%s3 + $0x20] sm:$0xf]
      %v578 = vld [vmem:[%s3 + $0x24] sm:$0xf]
      %v579 = vld [vmem:[%s3 + $0x28] sm:$0xf]
      %v580 = vld [vmem:[%s3 + $0x2c] sm:$0xf]
      %v581 = vld [vmem:[%s3 + $0x30] sm:$0xf]
      %v582 = vld [vmem:[%s3 + $0x34] sm:$0xf]
      %v583 = vld [vmem:[%s3 + $0x38] sm:$0xf]
      %v584 = vld [vmem:[%s3 + $0x3c] sm:$0xf]
      %v585 = vld [vmem:[%s6 + $0x2] ss:$0 sm:$0xff]
      %v602 = vunpack.c.l.b16 %v569
      %v603 = vunpack.c.l.b16 %v570
      %v604 = vunpack.c.l.b16 %v571
      %v605 = vunpack.c.l.b16 %v572
      %v606 = vunpack.c.l.b16 %v573
      %v607 = vunpack.c.l.b16 %v574
      %v608 = vunpack.c.l.b16 %v575
      %v609 = vunpack.c.l.b16 %v576
      %v610 = vunpack.c.l.b16 %v577
      %v611 = vunpack.c.l.b16 %v578
      %v612 = vunpack.c.l.b16 %v579
      %v613 = vunpack.c.l.b16 %v580
      %v614 = vunpack.c.l.b16 %v581
      %v615 = vunpack.c.l.b16 %v582
      %v616 = vunpack.c.l.b16 %v583
      %v617 = vunpack.c.l.b16 %v584
      %v618 = vpack.c.b16 %v603, %v602
      %v619 = vpack.c.b16 %v605, %v604
      %v620 = vpack.c.b16 %v607, %v606
      %v621 = vpack.c.b16 %v609, %v608
      %v622 = vpack.c.b16 %v611, %v610
      %v623 = vpack.c.b16 %v613, %v612
      %v624 = vpack.c.b16 %v615, %v614
      %v625 = vpack.c.b16 %v617, %v616
      %634 = vmatprep.subr.bf16.mxu0 0
      %635 = vmatpush1.bf16.msra.mxu0 %v618
      %636 = vmatprep.subr.bf16.mxu0 0
      %637 = vmatpush1.bf16.msra.mxu0 %v619
      %638 = vmatprep.subr.bf16.mxu0 0
      %639 = vmatpush1.bf16.msra.mxu0 %v620
      %640 = vmatprep.subr.bf16.mxu0 0
      %641 = vmatpush1.bf16.msra.mxu0 %v621
      %642 = vmatprep.subr.bf16.mxu0 0
      %643 = vmatpush1.bf16.msra.mxu0 %v622
      %644 = vmatprep.subr.bf16.mxu0 0
      %645 = vmatpush1.bf16.msra.mxu0 %v623
      %646 = vmatprep.subr.bf16.mxu0 0
      %647 = vmatpush1.bf16.msra.mxu0 %v624
      %648 = vmatprep.subr.bf16.mxu0 0
      %649 = vmatpush1.bf16.msra.mxu0 %v625
      %650 = vmatprep.subr.bf16.mxu0 0
      %651 = vmatpush1.bf16.msra.mxu0 0
      %652 = vmatprep.subr.bf16.mxu0 0
      %653 = vmatpush1.bf16.msra.mxu0 0
      %654 = vmatprep.subr.bf16.mxu0 0
      %655 = vmatpush1.bf16.msra.mxu0 0
      %656 = vmatprep.subr.bf16.mxu0 0
      %657 = vmatpush1.bf16.msra.mxu0 0
      %658 = vmatprep.subr.bf16.mxu0 0
      %659 = vmatpush1.bf16.msra.mxu0 0
      %660 = vmatprep.subr.bf16.mxu0 0
      %661 = vmatpush1.bf16.msra.mxu0 0
      %662 = vmatprep.subr.bf16.mxu0 0
      %663 = vmatpush1.bf16.msra.mxu0 0
      %664 = vmatprep.subr.bf16.mxu0 0
      %665 = vmatpush1.bf16.msra.mxu0 0
      %666 = vmatprep.mubr.bf16.mxu0 0
      %667 = vmatmul.mubr.bf16.gmra.mrb[0].mxu0 %v567
      %v668 = vpop.f32.mrb[0].mxu0
      %v669 = vadd.f32 %v585, %v668
      %v670 = vpop.f32.mrb[0].mxu0
      %v671 = vpop.f32.mrb[0].mxu0
      %v672 = vadd.f32 %v585, %v671
      %v673 = vpop.f32.mrb[0].mxu0
      %674 = vmatprep.mubr.bf16.mxu0 0
      %675 = vmatmul.mubr.bf16.gmra.mrb[0].mxu0 %v568
      %v676 = vpop.f32.mrb[0].mxu0
      %v677 = vadd.f32 %v585, %v676
      %v678 = vpop.f32.mrb[0].mxu0
      %v679 = vpop.f32.mrb[0].mxu0
      %v680 = vadd.f32 %v585, %v679
      %v681 = vpop.f32.mrb[0].mxu0
      %682 = vdwg.mxu0
      %v683 = vmax.f32 %v669, 0.0
      %v684 = vmax.f32 %v672, 0.0
      %v685 = vmax.f32 %v677, 0.0
      %v686 = vmax.f32 %v680, 0.0
      %v687 = vpack.c.bf16 %v684, %v683
      %v688 = vpack.c.bf16 %v686, %v685
      %v689 = vld [vmem:[%s4] sm:$0xf]
      %v690 = vld [vmem:[%s4 + $0x4] sm:$0xf]
      %v691 = vld [vmem:[%s4 + $0x8] sm:$0xf]
      %v692 = vld [vmem:[%s4 + $0xc] sm:$0xf]
      %v693 = vld [vmem:[%s4 + $0x10] sm:$0xf]
      %v694 = vld [vmem:[%s4 + $0x14] sm:$0xf]
      %v695 = vld [vmem:[%s4 + $0x18] sm:$0xf]
      %v696 = vld [vmem:[%s4 + $0x1c] sm:$0xf]
      %v697 = vld [vmem:[%s4 + $0x20] sm:$0xf]
      %v698 = vld [vmem:[%s4 + $0x24] sm:$0xf]
      %v699 = vld [vmem:[%s4 + $0x28] sm:$0xf]
      %v700 = vld [vmem:[%s4 + $0x2c] sm:$0xf]
      %v701 = vld [vmem:[%s4 + $0x30] sm:$0xf]
      %v702 = vld [vmem:[%s4 + $0x34] sm:$0xf]
      %v703 = vld [vmem:[%s4 + $0x38] sm:$0xf]
      %v704 = vld [vmem:[%s4 + $0x3c] sm:$0xf]
      %v705 = vld [vmem:[%s6 + $0x3] ss:$0 sm:$0xff]
      %v722 = vunpack.c.l.b16 %v689
      %v723 = vunpack.c.l.b16 %v690
      %v724 = vunpack.c.l.b16 %v691
      %v725 = vunpack.c.l.b16 %v692
      %v726 = vunpack.c.l.b16 %v693
      %v727 = vunpack.c.l.b16 %v694
      %v728 = vunpack.c.l.b16 %v695
      %v729 = vunpack.c.l.b16 %v696
      %v730 = vunpack.c.l.b16 %v697
      %v731 = vunpack.c.l.b16 %v698
      %v732 = vunpack.c.l.b16 %v699
      %v733 = vunpack.c.l.b16 %v700
      %v734 = vunpack.c.l.b16 %v701
      %v735 = vunpack.c.l.b16 %v702
      %v736 = vunpack.c.l.b16 %v703
      %v737 = vunpack.c.l.b16 %v704
      %v738 = vpack.c.b16 %v723, %v722
      %v739 = vpack.c.b16 %v725, %v724
      %v740 = vpack.c.b16 %v727, %v726
      %v741 = vpack.c.b16 %v729, %v728
      %v742 = vpack.c.b16 %v731, %v730
      %v743 = vpack.c.b16 %v733, %v732
      %v744 = vpack.c.b16 %v735, %v734
      %v745 = vpack.c.b16 %v737, %v736
      %754 = vmatprep.subr.bf16.mxu0 0
      %755 = vmatpush1.bf16.msra.mxu0 %v738
      %756 = vmatprep.subr.bf16.mxu0 0
      %757 = vmatpush1.bf16.msra.mxu0 %v739
      %758 = vmatprep.subr.bf16.mxu0 0
      %759 = vmatpush1.bf16.msra.mxu0 %v740
      %760 = vmatprep.subr.bf16.mxu0 0
      %761 = vmatpush1.bf16.msra.mxu0 %v741
      %762 = vmatprep.subr.bf16.mxu0 0
      %763 = vmatpush1.bf16.msra.mxu0 %v742
      %764 = vmatprep.subr.bf16.mxu0 0
      %765 = vmatpush1.bf16.msra.mxu0 %v743
      %766 = vmatprep.subr.bf16.mxu0 0
      %767 = vmatpush1.bf16.msra.mxu0 %v744
      %768 = vmatprep.subr.bf16.mxu0 0
      %769 = vmatpush1.bf16.msra.mxu0 %v745
      %770 = vmatprep.subr.bf16.mxu0 0
      %771 = vmatpush1.bf16.msra.mxu0 0
      %772 = vmatprep.subr.bf16.mxu0 0
      %773 = vmatpush1.bf16.msra.mxu0 0
      %774 = vmatprep.subr.bf16.mxu0 0
      %775 = vmatpush1.bf16.msra.mxu0 0
      %776 = vmatprep.subr.bf16.mxu0 0
      %777 = vmatpush1.bf16.msra.mxu0 0
      %778 = vmatprep.subr.bf16.mxu0 0
      %779 = vmatpush1.bf16.msra.mxu0 0
      %780 = vmatprep.subr.bf16.mxu0 0
      %781 = vmatpush1.bf16.msra.mxu0 0
      %782 = vmatprep.subr.bf16.mxu0 0
      %783 = vmatpush1.bf16.msra.mxu0 0
      %784 = vmatprep.subr.bf16.mxu0 0
      %785 = vmatpush1.bf16.msra.mxu0 0
      %786 = vmatprep.mubr.bf16.mxu0 0
      %787 = vmatmul.mubr.bf16.gmra.mrb[0].mxu0 %v687
      %v788 = vpop.f32.mrb[0].mxu0
      %v789 = vadd.f32 %v705, %v788
      %v790 = vpop.f32.mrb[0].mxu0
      %v791 = vpop.f32.mrb[0].mxu0
      %v792 = vadd.f32 %v705, %v791
      %v793 = vpop.f32.mrb[0].mxu0
      %794 = vmatprep.mubr.bf16.mxu0 0
      %795 = vmatmul.mubr.bf16.gmra.mrb[0].mxu0 %v688
      %v796 = vpop.f32.mrb[0].mxu0
      %v797 = vadd.f32 %v705, %v796
      %v798 = vpop.f32.mrb[0].mxu0
      %v799 = vpop.f32.mrb[0].mxu0
      %v800 = vadd.f32 %v705, %v799
      %v801 = vpop.f32.mrb[0].mxu0
      %802 = vdwg.mxu0
      %v803 = vmax.f32 %v789, 0.0
      %v804 = vmax.f32 %v792, 0.0
      %v805 = vmax.f32 %v797, 0.0
      %v806 = vmax.f32 %v800, 0.0
      %v807 = vpack.c.bf16 %v804, %v803
      %v808 = vpack.c.bf16 %v806, %v805
      %v809 = vld [vmem:[%s5] sm:$0xf]
      %v810 = vld [vmem:[%s5 + $0x4] sm:$0xf]
      %v811 = vld [vmem:[%s5 + $0x8] sm:$0xf]
      %v812 = vld [vmem:[%s5 + $0xc] sm:$0xf]
      %v813 = vld [vmem:[%s5 + $0x10] sm:$0xf]
      %v814 = vld [vmem:[%s5 + $0x14] sm:$0xf]
      %v815 = vld [vmem:[%s5 + $0x18] sm:$0xf]
      %v816 = vld [vmem:[%s5 + $0x1c] sm:$0xf]
      %v817 = vld [vmem:[%s6 + $0x4] ss:$0 sm:$0xff]
      %v826 = vunpack.c.l.b16 %v809
      %v827 = vunpack.c.l.b16 %v810
      %v828 = vunpack.c.l.b16 %v811
      %v829 = vunpack.c.l.b16 %v812
      %v830 = vunpack.c.l.b16 %v813
      %v831 = vunpack.c.l.b16 %v814
      %v832 = vunpack.c.l.b16 %v815
      %v833 = vunpack.c.l.b16 %v816
      %v834 = vpack.c.b16 %v827, %v826
      %v835 = vpack.c.b16 %v829, %v828
      %v836 = vpack.c.b16 %v831, %v830
      %v837 = vpack.c.b16 %v833, %v832
      %vm842 = vcmask 523264
      %v844 = vsel %vm842, %v807, 0
      %v847 = vsel %vm842, %v808, 0
      %849 = vmatprep.subr.bf16.mxu0 0
      %850 = vmatpush1.bf16.msra.mxu0 %v834
      %851 = vmatprep.subr.bf16.mxu0 0
      %852 = vmatpush1.bf16.msra.mxu0 %v835
      %853 = vmatprep.subr.bf16.mxu0 0
      %854 = vmatpush1.bf16.msra.mxu0 %v836
      %855 = vmatprep.subr.bf16.mxu0 0
      %856 = vmatpush1.bf16.msra.mxu0 %v837
      %857 = vmatprep.subr.bf16.mxu0 0
      %858 = vmatpush1.bf16.msra.mxu0 0
      %859 = vmatprep.subr.bf16.mxu0 0
      %860 = vmatpush1.bf16.msra.mxu0 0
      %861 = vmatprep.subr.bf16.mxu0 0
      %862 = vmatpush1.bf16.msra.mxu0 0
      %863 = vmatprep.subr.bf16.mxu0 0
      %864 = vmatpush1.bf16.msra.mxu0 0
      %865 = vmatprep.subr.bf16.mxu0 0
      %866 = vmatpush1.bf16.msra.mxu0 0
      %867 = vmatprep.subr.bf16.mxu0 0
      %868 = vmatpush1.bf16.msra.mxu0 0
      %869 = vmatprep.subr.bf16.mxu0 0
      %870 = vmatpush1.bf16.msra.mxu0 0
      %871 = vmatprep.subr.bf16.mxu0 0
      %872 = vmatpush1.bf16.msra.mxu0 0
      %873 = vmatprep.subr.bf16.mxu0 0
      %874 = vmatpush1.bf16.msra.mxu0 0
      %875 = vmatprep.subr.bf16.mxu0 0
      %876 = vmatpush1.bf16.msra.mxu0 0
      %877 = vmatprep.subr.bf16.mxu0 0
      %878 = vmatpush1.bf16.msra.mxu0 0
      %879 = vmatprep.subr.bf16.mxu0 0
      %880 = vmatpush1.bf16.msra.mxu0 0
      %881 = vmatprep.mubr.bf16.mxu0 0
      %882 = vmatmul.mubr.bf16.gmra.mrb[0].mxu0 %v844
      %v883 = vpop.f32.mrb[0].mxu0
      %v884 = vadd.f32 %v817, %v883
      %v885 = vpop.f32.mrb[0].mxu0
      %v886 = vpop.f32.mrb[0].mxu0
      %v887 = vadd.f32 %v817, %v886
      %v888 = vpop.f32.mrb[0].mxu0
      %889 = vmatprep.mubr.bf16.mxu0 0
      %890 = vmatmul.mubr.bf16.gmra.mrb[0].mxu0 %v847
      %v891 = vpop.f32.mrb[0].mxu0
      %v892 = vadd.f32 %v817, %v891
      %v893 = vpop.f32.mrb[0].mxu0
      %v894 = vpop.f32.mrb[0].mxu0
      %v895 = vadd.f32 %v817, %v894
      %v896 = vpop.f32.mrb[0].mxu0
      %897 = vdwg.mxu0
      %898 = vst.msk [vmem:[%s280] sm:$0xff] %vm313, %v884
      %899 = vst.msk [vmem:[%s280 + $0x8] sm:$0xff] %vm313, %v887
      %900 = vst.msk [vmem:[%s280 + $0x10] sm:$0xff] %vm313, %v892
      %901 = vst.msk [vmem:[%s280 + $0x18] sm:$0xff] %vm313, %v895
      %s902 = smul.u32 4, %s18
      %p903 = scmp.lt.s32.totalorder %s902, 7
      %s904 = scalar_select %p903, %s902, 7
      %s905 = smul.addr %s904, 8
      %s906 = scalar_lea.vmem %s7, %s905
      // Predicated region
      $region49: #{dqn2_forward.1} parent=47 // pred_check
        %p907 = pneg %p188
      $region50: #{dqn2_forward.1} parent=47 // pred_check_branch
        %909 = sbr.rel (%p907) target = $region52
      $region51: #{dqn2_forward.1} parent=47 // pred_region
        %s910 = smul.u32 4, %s18
      $region52: #{dqn2_forward.1} parent=47 // pred_fallthru
        _
    $region48: #{dqn2_forward.1} parent=5 // pred_fallthru
      _
    %p911 = scmp.le.s32.totalorder 2, %s13
    // Predicated region
    $region53: #{dqn2_forward.1} parent=5 // pred_check
      %p912 = pneg %p911
    $region54: #{dqn2_forward.1} parent=5 // pred_check_branch
      %914 = sbr.rel (%p912) target = $region56
    $region55: #{dqn2_forward.1} parent=5 // pred_region
      %s915 = ssub.s32 %s13, 2
      // Predicated region
      $region57: #{dqn2_forward.1} parent=55 // pred_check
        %p916 = pneg %p194
      $region58: #{dqn2_forward.1} parent=55 // pred_check_branch
        %918 = sbr.rel (%p916) target = $region60
      $region59: #{dqn2_forward.1} parent=55 // pred_region
        %s919 = smul.u32 4, %s19
        %p920 = scmp.lt.s32.totalorder %s919, 7
        %s921 = scalar_select %p920, %s919, 7
        %s922 = smul.addr %s921, 8
        %s923 = scalar_lea.vmem %s7, %s922
      $region60: #{dqn2_forward.1} parent=55 // pred_fallthru
        _
    $region56: #{dqn2_forward.1} parent=5 // pred_fallthru
      _
  $region6: #{dqn2_forward.1} parent=0 // loop_footer
    %s17 = sadd.s32 1, %s13
  $region7: #{dqn2_forward.1} parent=0 // loop_footer_branch
    %12 = sbr.rel target = $region3
  $region8: #{dqn2_forward.1} parent=0 // loop_exit
    _

</llo_original>
